<compile_context>
chip_gen: v5e
topology: v5e:2x2
jax: 0.10.0
libtpu: 0.0.40
codegen_flags: <defaults>
</compile_context>

<pallas_src>
import functools

import numpy as np
import jax
import jax.numpy as jnp
from jax import lax
from jax.experimental import pallas as pl
from jax.experimental.pallas import tpu as pltpu


# Standard 200x200 BEV grid config used with this module (deterministic "init").
GRID_CONF = dict(
    xbound=[-50.0, 50.0, 0.5],
    ybound=[-50.0, 50.0, 0.5],
    zbound=[-10.0, 10.0, 20.0],
)
FACTOR = 5.0  # Rule.factor


def _gen_dx_bx(xbound, ybound, zbound):
    dx = np.array([row[2] for row in [xbound, ybound, zbound]], np.float32)
    bx = np.array([row[0] + row[2] / 2.0 for row in [xbound, ybound, zbound]],
                  np.float32)
    nx = np.array([(row[1] - row[0]) / row[2] for row in [xbound, ybound, zbound]],
                  np.int64)
    return dx, bx, nx


def _origin_row_col_offsets(dx, bx, lambda_=0.0):
    # Car footprint polygon in BEV cell coordinates.  The polygon is an
    # axis-aligned rectangle, so a rectangle fill reproduces
    # skimage.draw.polygon, and the footprint is separable into a full
    # row-offsets x col-offsets grid (required for the count-mask trick).
    # TODO(synk): general (non-rectangular) polygon rasterization not needed here.
    W, Hc = 1.85, 4.084
    pts = np.array([
        [-Hc / 2.0 + 0.5 - lambda_,  W / 2.0 + lambda_],
        [ Hc / 2.0 + 0.5 + lambda_,  W / 2.0 + lambda_],
        [ Hc / 2.0 + 0.5 + lambda_, -W / 2.0 - lambda_],
        [-Hc / 2.0 + 0.5 - lambda_, -W / 2.0 - lambda_],
    ])
    pts = (pts - bx[:2]) / dx[:2]
    r = pts[:, 1]
    c = pts[:, 0]
    rows = np.arange(np.ceil(r.min()), np.floor(r.max()) + 1, dtype=np.int64)
    cols = np.arange(np.ceil(c.min()), np.floor(c.max()) + 1, dtype=np.int64)
    return tuple(float(v) for v in rows), tuple(float(v) for v in cols)


def _pick_batch_tile(b):
    """Pick the per-step batch tile.

    Prefer tb in {8, 16, 32, 64} (multiple of 8 -> sublane-aligned (tb, N)
    output block) that divides b and leaves >= 2 grid steps; among those,
    prefer an even step count (v7x has 2 TensorCores), then the largest tile
    (amortizes the ~0.35 us per-step overhead).  Otherwise run the whole batch
    in one step: block == full array dims is always layout-legal and typical
    batches for this cost module are small.
    """
    cands = [tb for tb in (64, 32, 16, 8) if b % tb == 0 and b // tb >= 2]
    if cands:
        even = [tb for tb in cands if (b // tb) % 2 == 0]
        return even[0] if even else cands[0]
    # TODO(synk): very large batches with no multiple-of-8 divisor would need
    # batch padding or partial-block masking; not needed for realistic B here.
    return b


def _rule_kernel(trajs_ref, drivable_ref, out_ref,
                 *, dx0, dx1, h_bev, w_bev, row_offs, col_offs, factor):
    t = trajs_ref[...]        # (TB, N, 2) f32
    d = drivable_ref[...]     # (TB, H, W) producer dtype (f32/bf16/int8/uint8)

    tb, n_traj = t.shape[0], t.shape[1]

    # dangerous_area = logical_not(drivable_area); 0/1 in f32 (exact).
    dangerous = (d == 0).astype(jnp.float32)                 # (TB, H, W)

    r_f = t[:, :, 0] / dx0                                    # (TB, N)
    c_f = t[:, :, 1] / dx1                                    # (TB, N)

    row_iota = lax.broadcasted_iota(jnp.int32, (tb, n_traj, h_bev), 2)
    col_iota = lax.broadcasted_iota(jnp.int32, (tb, n_traj, w_bev), 2)

    # Row / col count masks.  Counts (not 0/1 bands) so that duplicate indices
    # produced by the border clamp are counted the same number of times as in
    # the reference gather.  .astype(int32) truncates toward zero like .long().
    r_cnt = jnp.zeros((tb, n_traj, h_bev), jnp.float32)
    for dr in row_offs:                                       # 4 offsets, unrolled
        rr = jnp.clip((r_f + dr).astype(jnp.int32), 0, h_bev - 1)
        r_cnt = r_cnt + (rr[:, :, None] == row_iota).astype(jnp.float32)

    c_cnt = jnp.zeros((tb, n_traj, w_bev), jnp.float32)
    for dc in col_offs:                                       # 8 offsets, unrolled
        cc = jnp.clip((c_f + dc).astype(jnp.int32), 0, w_bev - 1)
        c_cnt = c_cnt + (cc[:, :, None] == col_iota).astype(jnp.float32)

    # Row gather + row sum on the MXU: (TB,N,H) x (TB,H,W) -> (TB,N,W), all f32.
    tmp = jnp.einsum("bnh,bhw->bnw", r_cnt, dangerous,
                     preferred_element_type=jnp.float32)

    # Column gather + sum over the footprint via masked lane reduction.
    sub = jnp.sum(tmp * c_cnt, axis=-1)                       # (TB, N)

    # ego_velocity == 1, then * factor.
    out_ref[...] = sub * factor                               # (TB, N)


def rule_forward(trajs, drivable_area, *, grid_conf=GRID_CONF, factor=FACTOR):
    """trajs: (B, N, 2) f32; drivable_area: (B, 200, 200) -> (B, N) f32."""
    dx, bx, nx = _gen_dx_bx(**grid_conf)
    row_offs, col_offs = _origin_row_col_offsets(dx, bx, lambda_=0.0)

    b, n, _ = trajs.shape
    h_bev, w_bev = int(nx[0]), int(nx[1])
    assert drivable_area.shape == (b, h_bev, w_bev)

    # Accept the producer's dtype directly (f32/bf16/int8/uint8); only bool is
    # viewed as uint8 (same byte count).  No other wrapper-side cast/pad: the
    # kernel is HBM-bound on this array.
    if drivable_area.dtype == jnp.bool_:
        drivable_area = drivable_area.astype(jnp.uint8)

    tb = _pick_batch_tile(b)
    grid = (b // tb,)

    dmap_bytes = h_bev * w_bev * drivable_area.dtype.itemsize
    # Per-step VMEM: double-buffered drivable input + f32 dangerous temp +
    # count masks / matmul temp, plus generous headroom; sized so large tiles
    # also compile on v5e's 16 MiB default scoped limit.
    vmem_est = tb * (2 * dmap_bytes
                     + h_bev * w_bev * 4
                     + n * (h_bev + 2 * w_bev) * 4)
    vmem_limit = int(min(max(int(vmem_est * 1.5) + (8 << 20), 32 << 20), 64 << 20))

    cost = pl.CostEstimate(
        flops=2 * b * n * h_bev * w_bev,
        transcendentals=0,
        bytes_accessed=b * (dmap_bytes + n * 2 * 4 + n * 4),
    )

    kernel = functools.partial(
        _rule_kernel,
        dx0=float(dx[0]), dx1=float(dx[1]),
        h_bev=h_bev, w_bev=w_bev,
        row_offs=row_offs, col_offs=col_offs,
        factor=float(factor),
    )

    out = pl.pallas_call(
        kernel,
        out_shape=jax.ShapeDtypeStruct((b, n), jnp.float32),
        grid=grid,
        in_specs=[
            pl.BlockSpec((tb, n, 2), lambda i: (i, 0, 0)),
            pl.BlockSpec((tb, h_bev, w_bev), lambda i: (i, 0, 0)),
        ],
        out_specs=pl.BlockSpec((tb, n), lambda i: (i, 0)),
        compiler_params=pltpu.CompilerParams(
            dimension_semantics=("parallel",),
            vmem_limit_bytes=vmem_limit,
        ),
        cost_estimate=cost,
    )(trajs.astype(jnp.float32), drivable_area)
    return out


def rule_reference(trajs, drivable, grid_conf=GRID_CONF, factor=FACTOR):
    """Pure numpy reference mirroring the PyTorch module."""
    dx, bx, nx = _gen_dx_bx(**grid_conf)
    rows, cols = _origin_row_col_offsets(dx, bx, lambda_=0.0)
    RR, CC = np.meshgrid(np.array(rows), np.array(cols), indexing="ij")
    rc = np.stack([RR.ravel(), CC.ravel()], axis=-1).astype(np.float32)  # (P, 2)

    dangerous = (drivable == 0).astype(np.float32)
    b, n, _ = trajs.shape
    t = trajs.reshape(b, n, 1, 2) / dx[:2] + rc                    # (B, N, P, 2)
    rr = np.clip(t[..., 0].astype(np.int64), 0, int(nx[0]) - 1)
    cc = np.clip(t[..., 1].astype(np.int64), 0, int(nx[1]) - 1)
    sub = dangerous[np.arange(b)[:, None, None], rr, cc].sum(-1)
    return sub * factor


if __name__ == "__main__":
    key = jax.random.PRNGKey(0)
    k1, k2 = jax.random.split(key)
    B, N = 2, 8
    trajs = jax.random.uniform(k1, (B, N, 2), jnp.float32, minval=-20.0, maxval=20.0)
    drivable_area = (jax.random.uniform(k2, (B, 200, 200)) > 0.5).astype(jnp.float32)

    out = rule_forward(trajs, drivable_area)
    out = jax.block_until_ready(out)

    ref = rule_reference(np.asarray(trajs), np.asarray(drivable_area))
    assert out.shape == (B, N)
    assert np.allclose(np.asarray(out), ref, atol=1e-4), (np.asarray(out), ref)
    print("KERNEL_OK")
</pallas_src>

<mosaic_0001>
module attributes {stable_mosaic.version = 11 : i64} {
  func.func @_rule_kernel(%arg0: i32, %arg1: memref<2x8x2xf32, #tpu.memory_space<vmem>>, %arg2: memref<2x200x200xf32, #tpu.memory_space<vmem>>, %arg3: memref<2x8xf32, #tpu.memory_space<vmem>>) attributes {dimension_semantics = [#tpu.dimension_semantics<parallel>], iteration_bounds = array<i64: 1>, scalar_prefetch = 0 : i64, scratch_operands = 0 : i64, tpu.core_type = #tpu.core_type<tc>, window_params = [{transform_indices = @transform_0, window_bounds = array<i64: 2, 8, 2>}, {transform_indices = @transform_1, window_bounds = array<i64: 2, 200, 200>}, {transform_indices = @transform_2, window_bounds = array<i64: 2, 8>}]} {
    %c0 = arith.constant 0 : index
    %c0_0 = arith.constant 0 : index
    %c0_1 = arith.constant 0 : index
    %0 = vector.load %arg1[%c0, %c0_0, %c0_1] : memref<2x8x2xf32, #tpu.memory_space<vmem>>, vector<2x8x2xf32>
    %c0_2 = arith.constant 0 : index
    %c0_3 = arith.constant 0 : index
    %c0_4 = arith.constant 0 : index
    %1 = vector.load %arg2[%c0_2, %c0_3, %c0_4] : memref<2x200x200xf32, #tpu.memory_space<vmem>>, vector<2x200x200xf32>
    %cst = arith.constant 0.000000e+00 : f32
    %2 = vector.broadcast %cst : f32 to vector<2x200x200xf32>
    %3 = arith.cmpf oeq, %1, %2 : vector<2x200x200xf32>
    %4 = arith.extui %3 : vector<2x200x200xi1> to vector<2x200x200xi32>
    %5 = arith.sitofp %4 : vector<2x200x200xi32> to vector<2x200x200xf32>
    %6 = vector.extract_strided_slice %0 {offsets = [0, 0, 0], sizes = [2, 8, 1], strides = [1, 1, 1]} : vector<2x8x2xf32> to vector<2x8x1xf32>
    %7 = vector.shape_cast %6 : vector<2x8x1xf32> to vector<2x8xf32>
    %cst_5 = arith.constant 5.000000e-01 : f32
    %8 = vector.broadcast %cst_5 : f32 to vector<2x8xf32>
    %9 = arith.divf %7, %8 : vector<2x8xf32>
    %10 = vector.extract_strided_slice %0 {offsets = [0, 0, 1], sizes = [2, 8, 1], strides = [1, 1, 1]} : vector<2x8x2xf32> to vector<2x8x1xf32>
    %11 = vector.shape_cast %10 : vector<2x8x1xf32> to vector<2x8xf32>
    %cst_6 = arith.constant 5.000000e-01 : f32
    %12 = vector.broadcast %cst_6 : f32 to vector<2x8xf32>
    %13 = arith.divf %11, %12 : vector<2x8xf32>
    %14 = tpu.iota {dimensions = array<i32: 2>} : vector<2x8x200xi32>
    %15 = tpu.iota {dimensions = array<i32: 2>} : vector<2x8x200xi32>
    %cst_7 = arith.constant 0.000000e+00 : f32
    %16 = vector.broadcast %cst_7 : f32 to vector<2x8x200xf32>
    %cst_8 = arith.constant 9.800000e+01 : f32
    %17 = vector.broadcast %cst_8 : f32 to vector<2x8xf32>
    %18 = arith.addf %9, %17 : vector<2x8xf32>
    %19 = arith.fptosi %18 : vector<2x8xf32> to vector<2x8xi32>
    %c0_i32 = arith.constant 0 : i32
    %c199_i32 = arith.constant 199 : i32
    %20 = vector.broadcast %c0_i32 : i32 to vector<2x8xi32>
    %21 = arith.maxsi %20, %19 : vector<2x8xi32>
    %22 = vector.broadcast %c199_i32 : i32 to vector<2x8xi32>
    %23 = arith.minsi %22, %21 : vector<2x8xi32>
    %24 = vector.shape_cast %23 : vector<2x8xi32> to vector<2x8x1xi32>
    %25 = vector.broadcast %24 : vector<2x8x1xi32> to vector<2x8x200xi32>
    %26 = arith.cmpi eq, %25, %14 : vector<2x8x200xi32>
    %27 = arith.extui %26 : vector<2x8x200xi1> to vector<2x8x200xi32>
    %28 = arith.sitofp %27 : vector<2x8x200xi32> to vector<2x8x200xf32>
    %29 = arith.addf %16, %28 : vector<2x8x200xf32>
    %cst_9 = arith.constant 9.900000e+01 : f32
    %30 = vector.broadcast %cst_9 : f32 to vector<2x8xf32>
    %31 = arith.addf %9, %30 : vector<2x8xf32>
    %32 = arith.fptosi %31 : vector<2x8xf32> to vector<2x8xi32>
    %c0_i32_10 = arith.constant 0 : i32
    %c199_i32_11 = arith.constant 199 : i32
    %33 = vector.broadcast %c0_i32_10 : i32 to vector<2x8xi32>
    %34 = arith.maxsi %33, %32 : vector<2x8xi32>
    %35 = vector.broadcast %c199_i32_11 : i32 to vector<2x8xi32>
    %36 = arith.minsi %35, %34 : vector<2x8xi32>
    %37 = vector.shape_cast %36 : vector<2x8xi32> to vector<2x8x1xi32>
    %38 = vector.broadcast %37 : vector<2x8x1xi32> to vector<2x8x200xi32>
    %39 = arith.cmpi eq, %38, %14 : vector<2x8x200xi32>
    %40 = arith.extui %39 : vector<2x8x200xi1> to vector<2x8x200xi32>
    %41 = arith.sitofp %40 : vector<2x8x200xi32> to vector<2x8x200xf32>
    %42 = arith.addf %29, %41 : vector<2x8x200xf32>
    %cst_12 = arith.constant 1.000000e+02 : f32
    %43 = vector.broadcast %cst_12 : f32 to vector<2x8xf32>
    %44 = arith.addf %9, %43 : vector<2x8xf32>
    %45 = arith.fptosi %44 : vector<2x8xf32> to vector<2x8xi32>
    %c0_i32_13 = arith.constant 0 : i32
    %c199_i32_14 = arith.constant 199 : i32
    %46 = vector.broadcast %c0_i32_13 : i32 to vector<2x8xi32>
    %47 = arith.maxsi %46, %45 : vector<2x8xi32>
    %48 = vector.broadcast %c199_i32_14 : i32 to vector<2x8xi32>
    %49 = arith.minsi %48, %47 : vector<2x8xi32>
    %50 = vector.shape_cast %49 : vector<2x8xi32> to vector<2x8x1xi32>
    %51 = vector.broadcast %50 : vector<2x8x1xi32> to vector<2x8x200xi32>
    %52 = arith.cmpi eq, %51, %14 : vector<2x8x200xi32>
    %53 = arith.extui %52 : vector<2x8x200xi1> to vector<2x8x200xi32>
    %54 = arith.sitofp %53 : vector<2x8x200xi32> to vector<2x8x200xf32>
    %55 = arith.addf %42, %54 : vector<2x8x200xf32>
    %cst_15 = arith.constant 1.010000e+02 : f32
    %56 = vector.broadcast %cst_15 : f32 to vector<2x8xf32>
    %57 = arith.addf %9, %56 : vector<2x8xf32>
    %58 = arith.fptosi %57 : vector<2x8xf32> to vector<2x8xi32>
    %c0_i32_16 = arith.constant 0 : i32
    %c199_i32_17 = arith.constant 199 : i32
    %59 = vector.broadcast %c0_i32_16 : i32 to vector<2x8xi32>
    %60 = arith.maxsi %59, %58 : vector<2x8xi32>
    %61 = vector.broadcast %c199_i32_17 : i32 to vector<2x8xi32>
    %62 = arith.minsi %61, %60 : vector<2x8xi32>
    %63 = vector.shape_cast %62 : vector<2x8xi32> to vector<2x8x1xi32>
    %64 = vector.broadcast %63 : vector<2x8x1xi32> to vector<2x8x200xi32>
    %65 = arith.cmpi eq, %64, %14 : vector<2x8x200xi32>
    %66 = arith.extui %65 : vector<2x8x200xi1> to vector<2x8x200xi32>
    %67 = arith.sitofp %66 : vector<2x8x200xi32> to vector<2x8x200xf32>
    %68 = arith.addf %55, %67 : vector<2x8x200xf32>
    %cst_18 = arith.constant 0.000000e+00 : f32
    %69 = vector.broadcast %cst_18 : f32 to vector<2x8x200xf32>
    %cst_19 = arith.constant 9.700000e+01 : f32
    %70 = vector.broadcast %cst_19 : f32 to vector<2x8xf32>
    %71 = arith.addf %13, %70 : vector<2x8xf32>
    %72 = arith.fptosi %71 : vector<2x8xf32> to vector<2x8xi32>
    %c0_i32_20 = arith.constant 0 : i32
    %c199_i32_21 = arith.constant 199 : i32
    %73 = vector.broadcast %c0_i32_20 : i32 to vector<2x8xi32>
    %74 = arith.maxsi %73, %72 : vector<2x8xi32>
    %75 = vector.broadcast %c199_i32_21 : i32 to vector<2x8xi32>
    %76 = arith.minsi %75, %74 : vector<2x8xi32>
    %77 = vector.shape_cast %76 : vector<2x8xi32> to vector<2x8x1xi32>
    %78 = vector.broadcast %77 : vector<2x8x1xi32> to vector<2x8x200xi32>
    %79 = arith.cmpi eq, %78, %15 : vector<2x8x200xi32>
    %80 = arith.extui %79 : vector<2x8x200xi1> to vector<2x8x200xi32>
    %81 = arith.sitofp %80 : vector<2x8x200xi32> to vector<2x8x200xf32>
    %82 = arith.addf %69, %81 : vector<2x8x200xf32>
    %cst_22 = arith.constant 9.800000e+01 : f32
    %83 = vector.broadcast %cst_22 : f32 to vector<2x8xf32>
    %84 = arith.addf %13, %83 : vector<2x8xf32>
    %85 = arith.fptosi %84 : vector<2x8xf32> to vector<2x8xi32>
    %c0_i32_23 = arith.constant 0 : i32
    %c199_i32_24 = arith.constant 199 : i32
    %86 = vector.broadcast %c0_i32_23 : i32 to vector<2x8xi32>
    %87 = arith.maxsi %86, %85 : vector<2x8xi32>
    %88 = vector.broadcast %c199_i32_24 : i32 to vector<2x8xi32>
    %89 = arith.minsi %88, %87 : vector<2x8xi32>
    %90 = vector.shape_cast %89 : vector<2x8xi32> to vector<2x8x1xi32>
    %91 = vector.broadcast %90 : vector<2x8x1xi32> to vector<2x8x200xi32>
    %92 = arith.cmpi eq, %91, %15 : vector<2x8x200xi32>
    %93 = arith.extui %92 : vector<2x8x200xi1> to vector<2x8x200xi32>
    %94 = arith.sitofp %93 : vector<2x8x200xi32> to vector<2x8x200xf32>
    %95 = arith.addf %82, %94 : vector<2x8x200xf32>
    %cst_25 = arith.constant 9.900000e+01 : f32
    %96 = vector.broadcast %cst_25 : f32 to vector<2x8xf32>
    %97 = arith.addf %13, %96 : vector<2x8xf32>
    %98 = arith.fptosi %97 : vector<2x8xf32> to vector<2x8xi32>
    %c0_i32_26 = arith.constant 0 : i32
    %c199_i32_27 = arith.constant 199 : i32
    %99 = vector.broadcast %c0_i32_26 : i32 to vector<2x8xi32>
    %100 = arith.maxsi %99, %98 : vector<2x8xi32>
    %101 = vector.broadcast %c199_i32_27 : i32 to vector<2x8xi32>
    %102 = arith.minsi %101, %100 : vector<2x8xi32>
    %103 = vector.shape_cast %102 : vector<2x8xi32> to vector<2x8x1xi32>
    %104 = vector.broadcast %103 : vector<2x8x1xi32> to vector<2x8x200xi32>
    %105 = arith.cmpi eq, %104, %15 : vector<2x8x200xi32>
    %106 = arith.extui %105 : vector<2x8x200xi1> to vector<2x8x200xi32>
    %107 = arith.sitofp %106 : vector<2x8x200xi32> to vector<2x8x200xf32>
    %108 = arith.addf %95, %107 : vector<2x8x200xf32>
    %cst_28 = arith.constant 1.000000e+02 : f32
    %109 = vector.broadcast %cst_28 : f32 to vector<2x8xf32>
    %110 = arith.addf %13, %109 : vector<2x8xf32>
    %111 = arith.fptosi %110 : vector<2x8xf32> to vector<2x8xi32>
    %c0_i32_29 = arith.constant 0 : i32
    %c199_i32_30 = arith.constant 199 : i32
    %112 = vector.broadcast %c0_i32_29 : i32 to vector<2x8xi32>
    %113 = arith.maxsi %112, %111 : vector<2x8xi32>
    %114 = vector.broadcast %c199_i32_30 : i32 to vector<2x8xi32>
    %115 = arith.minsi %114, %113 : vector<2x8xi32>
    %116 = vector.shape_cast %115 : vector<2x8xi32> to vector<2x8x1xi32>
    %117 = vector.broadcast %116 : vector<2x8x1xi32> to vector<2x8x200xi32>
    %118 = arith.cmpi eq, %117, %15 : vector<2x8x200xi32>
    %119 = arith.extui %118 : vector<2x8x200xi1> to vector<2x8x200xi32>
    %120 = arith.sitofp %119 : vector<2x8x200xi32> to vector<2x8x200xf32>
    %121 = arith.addf %108, %120 : vector<2x8x200xf32>
    %cst_31 = arith.constant 1.010000e+02 : f32
    %122 = vector.broadcast %cst_31 : f32 to vector<2x8xf32>
    %123 = arith.addf %13, %122 : vector<2x8xf32>
    %124 = arith.fptosi %123 : vector<2x8xf32> to vector<2x8xi32>
    %c0_i32_32 = arith.constant 0 : i32
    %c199_i32_33 = arith.constant 199 : i32
    %125 = vector.broadcast %c0_i32_32 : i32 to vector<2x8xi32>
    %126 = arith.maxsi %125, %124 : vector<2x8xi32>
    %127 = vector.broadcast %c199_i32_33 : i32 to vector<2x8xi32>
    %128 = arith.minsi %127, %126 : vector<2x8xi32>
    %129 = vector.shape_cast %128 : vector<2x8xi32> to vector<2x8x1xi32>
    %130 = vector.broadcast %129 : vector<2x8x1xi32> to vector<2x8x200xi32>
    %131 = arith.cmpi eq, %130, %15 : vector<2x8x200xi32>
    %132 = arith.extui %131 : vector<2x8x200xi1> to vector<2x8x200xi32>
    %133 = arith.sitofp %132 : vector<2x8x200xi32> to vector<2x8x200xf32>
    %134 = arith.addf %121, %133 : vector<2x8x200xf32>
    %cst_34 = arith.constant 1.020000e+02 : f32
    %135 = vector.broadcast %cst_34 : f32 to vector<2x8xf32>
    %136 = arith.addf %13, %135 : vector<2x8xf32>
    %137 = arith.fptosi %136 : vector<2x8xf32> to vector<2x8xi32>
    %c0_i32_35 = arith.constant 0 : i32
    %c199_i32_36 = arith.constant 199 : i32
    %138 = vector.broadcast %c0_i32_35 : i32 to vector<2x8xi32>
    %139 = arith.maxsi %138, %137 : vector<2x8xi32>
    %140 = vector.broadcast %c199_i32_36 : i32 to vector<2x8xi32>
    %141 = arith.minsi %140, %139 : vector<2x8xi32>
    %142 = vector.shape_cast %141 : vector<2x8xi32> to vector<2x8x1xi32>
    %143 = vector.broadcast %142 : vector<2x8x1xi32> to vector<2x8x200xi32>
    %144 = arith.cmpi eq, %143, %15 : vector<2x8x200xi32>
    %145 = arith.extui %144 : vector<2x8x200xi1> to vector<2x8x200xi32>
    %146 = arith.sitofp %145 : vector<2x8x200xi32> to vector<2x8x200xf32>
    %147 = arith.addf %134, %146 : vector<2x8x200xf32>
    %cst_37 = arith.constant 1.030000e+02 : f32
    %148 = vector.broadcast %cst_37 : f32 to vector<2x8xf32>
    %149 = arith.addf %13, %148 : vector<2x8xf32>
    %150 = arith.fptosi %149 : vector<2x8xf32> to vector<2x8xi32>
    %c0_i32_38 = arith.constant 0 : i32
    %c199_i32_39 = arith.constant 199 : i32
    %151 = vector.broadcast %c0_i32_38 : i32 to vector<2x8xi32>
    %152 = arith.maxsi %151, %150 : vector<2x8xi32>
    %153 = vector.broadcast %c199_i32_39 : i32 to vector<2x8xi32>
    %154 = arith.minsi %153, %152 : vector<2x8xi32>
    %155 = vector.shape_cast %154 : vector<2x8xi32> to vector<2x8x1xi32>
    %156 = vector.broadcast %155 : vector<2x8x1xi32> to vector<2x8x200xi32>
    %157 = arith.cmpi eq, %156, %15 : vector<2x8x200xi32>
    %158 = arith.extui %157 : vector<2x8x200xi1> to vector<2x8x200xi32>
    %159 = arith.sitofp %158 : vector<2x8x200xi32> to vector<2x8x200xf32>
    %160 = arith.addf %147, %159 : vector<2x8x200xf32>
    %cst_40 = arith.constant 1.040000e+02 : f32
    %161 = vector.broadcast %cst_40 : f32 to vector<2x8xf32>
    %162 = arith.addf %13, %161 : vector<2x8xf32>
    %163 = arith.fptosi %162 : vector<2x8xf32> to vector<2x8xi32>
    %c0_i32_41 = arith.constant 0 : i32
    %c199_i32_42 = arith.constant 199 : i32
    %164 = vector.broadcast %c0_i32_41 : i32 to vector<2x8xi32>
    %165 = arith.maxsi %164, %163 : vector<2x8xi32>
    %166 = vector.broadcast %c199_i32_42 : i32 to vector<2x8xi32>
    %167 = arith.minsi %166, %165 : vector<2x8xi32>
    %168 = vector.shape_cast %167 : vector<2x8xi32> to vector<2x8x1xi32>
    %169 = vector.broadcast %168 : vector<2x8x1xi32> to vector<2x8x200xi32>
    %170 = arith.cmpi eq, %169, %15 : vector<2x8x200xi32>
    %171 = arith.extui %170 : vector<2x8x200xi1> to vector<2x8x200xi32>
    %172 = arith.sitofp %171 : vector<2x8x200xi32> to vector<2x8x200xf32>
    %173 = arith.addf %160, %172 : vector<2x8x200xf32>
    "tpu.trace_start"() <{level = 10 : i32, message = "bnh,bhw->bnw"}> : () -> ()
    %cst_43 = arith.constant dense<0.000000e+00> : vector<2x8x200xf32>
    %174 = tpu.matmul %68, %5, %cst_43 {dimension_numbers = #tpu.dot_dimension_numbers<[2], [1], [1], [2], [0, 0, 0, 1, 1, 2], [0], [0]>} : vector<2x8x200xf32>, vector<2x200x200xf32>, vector<2x8x200xf32> -> vector<2x8x200xf32>
    "tpu.trace_stop"() : () -> ()
    %175 = arith.mulf %174, %173 : vector<2x8x200xf32>
    %cst_44 = arith.constant dense<0.000000e+00> : vector<2x8xf32>
    %176 = vector.multi_reduction <add>, %175, %cst_44 [2] : vector<2x8x200xf32> to vector<2x8xf32>
    %cst_45 = arith.constant 5.000000e+00 : f32
    %177 = vector.broadcast %cst_45 : f32 to vector<2x8xf32>
    %178 = arith.mulf %176, %177 : vector<2x8xf32>
    %c0_46 = arith.constant 0 : index
    %c0_47 = arith.constant 0 : index
    %179 = vector.load %arg3[%c0_46, %c0_47] : memref<2x8xf32, #tpu.memory_space<vmem>>, vector<2x8xf32>
    tpu.vector_store %arg3[%c0_46, %c0_47], %178 {strides = array<i32>} : memref<2x8xf32, #tpu.memory_space<vmem>>, vector<2x8xf32>,
    return
  }
  func.func @transform_0(%arg0: i32) -> (i32, i32, i32) {
    %c0_i32 = arith.constant 0 : i32
    %c0_i32_0 = arith.constant 0 : i32
    %c0_i32_1 = arith.constant 0 : i32
    return %arg0, %c0_i32, %c0_i32_0 : i32, i32, i32
  }
  func.func @transform_1(%arg0: i32) -> (i32, i32, i32) {
    %c0_i32 = arith.constant 0 : i32
    %c0_i32_0 = arith.constant 0 : i32
    %c0_i32_1 = arith.constant 0 : i32
    return %arg0, %c0_i32, %c0_i32_0 : i32, i32, i32
  }
  func.func @transform_2(%arg0: i32) -> (i32, i32) {
    %c0_i32 = arith.constant 0 : i32
    %c0_i32_0 = arith.constant 0 : i32
    return %arg0, %c0_i32 : i32, i32
  }
}

</mosaic_0001>

<llo_original>
// kernel: tpu_custom_call.1
$region0: #{tpu_custom_call.1}
  #allocation0 [shape = 'u32[]', space=smem, size = 0x4, offset = 0x4, fixed_abs, tag = 'smem constant byte address 0x4 - core index']
  #allocation1 [shape = 'u32[72,128]{1,0:T(1,128)}', space=vmem, size = 0x9000, scoped, tag = 'internal scratch']
  %s0 = inlined_call_operand.vmem [shape: f32[2,8,2], index: 0, kind: input, shape index: {}]
  %s1 = inlined_call_operand.hbm [shape: f32[2,200,200], index: 1, kind: input, shape index: {}]
  %s2 = inlined_call_operand.hbm [shape: f32[2,8], index: 2, kind: output, shape index: {}]
  %s3 = sld [smem:[#allocation0]]
  $region22: #{tpu_custom_call.1} parent=0
    _
  %s5 = ssub.s32 1, %s3
  %s6 = scalar_select 0, %s5, %s3
  $region1: #{tpu_custom_call.1} parent=0
    #allocation2 [shape = 'u8[409600]{0}', space=vmem, size = 0x64000, scoped, tag = 'input window, operand 1, single buffered']
    #allocation3 [shape = 's32[1]{0}', space=sflag, size = 0x4, scoped, tag = 'scoped memory for tpu_custom_call.1']
    #allocation4 [shape = 's32[1]{0}', space=sflag, size = 0x4, scoped, tag = 'scoped memory for tpu_custom_call.1']
    #allocation5 [shape = 'u8[1024]{0}', space=vmem, size = 0x400, scoped, tag = 'output window, operand 0, single buffered']
    %7 = vsyncpa [#allocation3], 0
    %8 = vsyncpa [#allocation4], 0
    // Predicated region
    $region2: #{tpu_custom_call.1} parent=1 // pred_check
      _
    $region3: #{tpu_custom_call.1} parent=1 // pred_check_branch
      %10 = sbr.rel (0) target = $region5
    $region4: #{tpu_custom_call.1} parent=1 // pred_region
      _
    $region5: #{tpu_custom_call.1} parent=1 // pred_fallthru
      _
    // Predicated region
    $region6: #{tpu_custom_call.1} parent=1 // pred_check
      _
    $region7: #{tpu_custom_call.1} parent=1 // pred_check_branch
      %12 = sbr.rel (0) target = $region9
    $region8: #{tpu_custom_call.1} parent=1 // pred_region
      %14 = vsyncadd [#allocation3], 0
      %s15 = sshll.u32 %s1, 4
      %s16 = int_to_ptr.hbm [resolvable:$true] %s15
      %s17 = sshll.u32 [#allocation2], 4
      %s18 = int_to_ptr.vmem [resolvable:$true] %s17
      %23 = dma.hbm_to_vmem [thread:$0]  %s16, 12800, %s18, [#allocation3], 256, 256, 16
    $region9: #{tpu_custom_call.1} parent=1 // pred_fallthru
      _
    // Predicated region
    $region10: #{tpu_custom_call.1} parent=1 // pred_check
      _
    $region11: #{tpu_custom_call.1} parent=1 // pred_check_branch
      %25 = sbr.rel (0) target = $region13
    $region12: #{tpu_custom_call.1} parent=1 // pred_region
      %27 = dma.done [#allocation3], 12800
    $region13: #{tpu_custom_call.1} parent=1 // pred_fallthru
      _
    %v28 = vld [vmem:[%s0] sm:$0xff]
    %v29 = vld [vmem:[%s0 + $0x8] sm:$0xff]
    %v30 = vld [vmem:[#allocation2] sm:$0xff]
    %v31 = vld [vmem:[#allocation2 + $0x8] sm:$0xff]
    %v32 = vld [vmem:[#allocation2 + $0x10] sm:$0xff]
    %v33 = vld [vmem:[#allocation2 + $0x18] sm:$0xff]
    %v34 = vld [vmem:[#allocation2 + $0x20] sm:$0xff]
    %v35 = vld [vmem:[#allocation2 + $0x28] sm:$0xff]
    %v36 = vld [vmem:[#allocation2 + $0x30] sm:$0xff]
    %v37 = vld [vmem:[#allocation2 + $0x38] sm:$0xff]
    %v38 = vld [vmem:[#allocation2 + $0x40] sm:$0xff]
    %v39 = vld [vmem:[#allocation2 + $0x48] sm:$0xff]
    %v40 = vld [vmem:[#allocation2 + $0x50] sm:$0xff]
    %v41 = vld [vmem:[#allocation2 + $0x58] sm:$0xff]
    %v42 = vld [vmem:[#allocation2 + $0x60] sm:$0xff]
    %v43 = vld [vmem:[#allocation2 + $0x68] sm:$0xff]
    %v44 = vld [vmem:[#allocation2 + $0x70] sm:$0xff]
    %v45 = vld [vmem:[#allocation2 + $0x78] sm:$0xff]
    %v46 = vld [vmem:[#allocation2 + $0x80] sm:$0xff]
    %v47 = vld [vmem:[#allocation2 + $0x88] sm:$0xff]
    %v48 = vld [vmem:[#allocation2 + $0x90] sm:$0xff]
    %v49 = vld [vmem:[#allocation2 + $0x98] sm:$0xff]
    %v50 = vld [vmem:[#allocation2 + $0xa0] sm:$0xff]
    %v51 = vld [vmem:[#allocation2 + $0xa8] sm:$0xff]
    %v52 = vld [vmem:[#allocation2 + $0xb0] sm:$0xff]
    %v53 = vld [vmem:[#allocation2 + $0xb8] sm:$0xff]
    %v54 = vld [vmem:[#allocation2 + $0xc0] sm:$0xff]
    %v55 = vld [vmem:[#allocation2 + $0xc8] sm:$0xff]
    %v56 = vld [vmem:[#allocation2 + $0xd0] sm:$0xff]
    %v57 = vld [vmem:[#allocation2 + $0xd8] sm:$0xff]
    %v58 = vld [vmem:[#allocation2 + $0xe0] sm:$0xff]
    %v59 = vld [vmem:[#allocation2 + $0xe8] sm:$0xff]
    %v60 = vld [vmem:[#allocation2 + $0xf0] sm:$0xff]
    %v61 = vld [vmem:[#allocation2 + $0xf8] sm:$0xff]
    %v62 = vld [vmem:[#allocation2 + $0x100] sm:$0xff]
    %v63 = vld [vmem:[#allocation2 + $0x108] sm:$0xff]
    %v64 = vld [vmem:[#allocation2 + $0x110] sm:$0xff]
    %v65 = vld [vmem:[#allocation2 + $0x118] sm:$0xff]
    %v66 = vld [vmem:[#allocation2 + $0x120] sm:$0xff]
    %v67 = vld [vmem:[#allocation2 + $0x128] sm:$0xff]
    %v68 = vld [vmem:[#allocation2 + $0x130] sm:$0xff]
    %v69 = vld [vmem:[#allocation2 + $0x138] sm:$0xff]
    %v70 = vld [vmem:[#allocation2 + $0x140] sm:$0xff]
    %v71 = vld [vmem:[#allocation2 + $0x148] sm:$0xff]
    %v72 = vld [vmem:[#allocation2 + $0x150] sm:$0xff]
    %v73 = vld [vmem:[#allocation2 + $0x158] sm:$0xff]
    %v74 = vld [vmem:[#allocation2 + $0x160] sm:$0xff]
    %v75 = vld [vmem:[#allocation2 + $0x168] sm:$0xff]
    %v76 = vld [vmem:[#allocation2 + $0x170] sm:$0xff]
    %v77 = vld [vmem:[#allocation2 + $0x178] sm:$0xff]
    %v78 = vld [vmem:[#allocation2 + $0x180] sm:$0xff]
    %v79 = vld [vmem:[#allocation2 + $0x188] sm:$0xff]
    %v80 = vld [vmem:[#allocation2 + $0x190] sm:$0xff]
    %v81 = vld [vmem:[#allocation2 + $0x198] sm:$0xff]
    %v82 = vld [vmem:[#allocation2 + $0x1a0] sm:$0xff]
    %v83 = vld [vmem:[#allocation2 + $0x1a8] sm:$0xff]
    %v84 = vld [vmem:[#allocation2 + $0x1b0] sm:$0xff]
    %v85 = vld [vmem:[#allocation2 + $0x1b8] sm:$0xff]
    %v86 = vld [vmem:[#allocation2 + $0x1c0] sm:$0xff]
    %v87 = vld [vmem:[#allocation2 + $0x1c8] sm:$0xff]
    %v88 = vld [vmem:[#allocation2 + $0x1d0] sm:$0xff]
    %v89 = vld [vmem:[#allocation2 + $0x1d8] sm:$0xff]
    %v90 = vld [vmem:[#allocation2 + $0x1e0] sm:$0xff]
    %v91 = vld [vmem:[#allocation2 + $0x1e8] sm:$0xff]
    %v92 = vld [vmem:[#allocation2 + $0x1f0] sm:$0xff]
    %v93 = vld [vmem:[#allocation2 + $0x1f8] sm:$0xff]
    %v94 = vld [vmem:[#allocation2 + $0x200] sm:$0xff]
    %v95 = vld [vmem:[#allocation2 + $0x208] sm:$0xff]
    %v96 = vld [vmem:[#allocation2 + $0x210] sm:$0xff]
    %v97 = vld [vmem:[#allocation2 + $0x218] sm:$0xff]
    %v98 = vld [vmem:[#allocation2 + $0x220] sm:$0xff]
    %v99 = vld [vmem:[#allocation2 + $0x228] sm:$0xff]
    %v100 = vld [vmem:[#allocation2 + $0x230] sm:$0xff]
    %v101 = vld [vmem:[#allocation2 + $0x238] sm:$0xff]
    %v102 = vld [vmem:[#allocation2 + $0x240] sm:$0xff]
    %v103 = vld [vmem:[#allocation2 + $0x248] sm:$0xff]
    %v104 = vld [vmem:[#allocation2 + $0x250] sm:$0xff]
    %v105 = vld [vmem:[#allocation2 + $0x258] sm:$0xff]
    %v106 = vld [vmem:[#allocation2 + $0x260] sm:$0xff]
    %v107 = vld [vmem:[#allocation2 + $0x268] sm:$0xff]
    %v108 = vld [vmem:[#allocation2 + $0x270] sm:$0xff]
    %v109 = vld [vmem:[#allocation2 + $0x278] sm:$0xff]
    %v110 = vld [vmem:[#allocation2 + $0x280] sm:$0xff]
    %v111 = vld [vmem:[#allocation2 + $0x288] sm:$0xff]
    %v112 = vld [vmem:[#allocation2 + $0x290] sm:$0xff]
    %v113 = vld [vmem:[#allocation2 + $0x298] sm:$0xff]
    %v114 = vld [vmem:[#allocation2 + $0x2a0] sm:$0xff]
    %v115 = vld [vmem:[#allocation2 + $0x2a8] sm:$0xff]
    %v116 = vld [vmem:[#allocation2 + $0x2b0] sm:$0xff]
    %v117 = vld [vmem:[#allocation2 + $0x2b8] sm:$0xff]
    %v118 = vld [vmem:[#allocation2 + $0x2c0] sm:$0xff]
    %v119 = vld [vmem:[#allocation2 + $0x2c8] sm:$0xff]
    %v120 = vld [vmem:[#allocation2 + $0x2d0] sm:$0xff]
    %v121 = vld [vmem:[#allocation2 + $0x2d8] sm:$0xff]
    %v122 = vld [vmem:[#allocation2 + $0x2e0] sm:$0xff]
    %v123 = vld [vmem:[#allocation2 + $0x2e8] sm:$0xff]
    %v124 = vld [vmem:[#allocation2 + $0x2f0] sm:$0xff]
    %v125 = vld [vmem:[#allocation2 + $0x2f8] sm:$0xff]
    %v126 = vld [vmem:[#allocation2 + $0x300] sm:$0xff]
    %v127 = vld [vmem:[#allocation2 + $0x308] sm:$0xff]
    %v128 = vld [vmem:[#allocation2 + $0x310] sm:$0xff]
    %v129 = vld [vmem:[#allocation2 + $0x318] sm:$0xff]
    %vm130 = vcmp.eq.f32.partialorder %v30, 0.0
    %vm131 = vcmp.eq.f32.partialorder %v31, 0.0
    %vm132 = vcmp.eq.f32.partialorder %v32, 0.0
    %vm133 = vcmp.eq.f32.partialorder %v33, 0.0
    %vm134 = vcmp.eq.f32.partialorder %v34, 0.0
    %vm135 = vcmp.eq.f32.partialorder %v35, 0.0
    %vm136 = vcmp.eq.f32.partialorder %v36, 0.0
    %vm137 = vcmp.eq.f32.partialorder %v37, 0.0
    %vm138 = vcmp.eq.f32.partialorder %v38, 0.0
    %vm139 = vcmp.eq.f32.partialorder %v39, 0.0
    %vm140 = vcmp.eq.f32.partialorder %v40, 0.0
    %vm141 = vcmp.eq.f32.partialorder %v41, 0.0
    %vm142 = vcmp.eq.f32.partialorder %v42, 0.0
    %vm143 = vcmp.eq.f32.partialorder %v43, 0.0
    %vm144 = vcmp.eq.f32.partialorder %v44, 0.0
    %vm145 = vcmp.eq.f32.partialorder %v45, 0.0
    %vm146 = vcmp.eq.f32.partialorder %v46, 0.0
    %vm147 = vcmp.eq.f32.partialorder %v47, 0.0
    %vm148 = vcmp.eq.f32.partialorder %v48, 0.0
    %vm149 = vcmp.eq.f32.partialorder %v49, 0.0
    %vm150 = vcmp.eq.f32.partialorder %v50, 0.0
    %vm151 = vcmp.eq.f32.partialorder %v51, 0.0
    %vm152 = vcmp.eq.f32.partialorder %v52, 0.0
    %vm153 = vcmp.eq.f32.partialorder %v53, 0.0
    %vm154 = vcmp.eq.f32.partialorder %v54, 0.0
    %vm155 = vcmp.eq.f32.partialorder %v55, 0.0
    %vm156 = vcmp.eq.f32.partialorder %v56, 0.0
    %vm157 = vcmp.eq.f32.partialorder %v57, 0.0
    %vm158 = vcmp.eq.f32.partialorder %v58, 0.0
    %vm159 = vcmp.eq.f32.partialorder %v59, 0.0
    %vm160 = vcmp.eq.f32.partialorder %v60, 0.0
    %vm161 = vcmp.eq.f32.partialorder %v61, 0.0
    %vm162 = vcmp.eq.f32.partialorder %v62, 0.0
    %vm163 = vcmp.eq.f32.partialorder %v63, 0.0
    %vm164 = vcmp.eq.f32.partialorder %v64, 0.0
    %vm165 = vcmp.eq.f32.partialorder %v65, 0.0
    %vm166 = vcmp.eq.f32.partialorder %v66, 0.0
    %vm167 = vcmp.eq.f32.partialorder %v67, 0.0
    %vm168 = vcmp.eq.f32.partialorder %v68, 0.0
    %vm169 = vcmp.eq.f32.partialorder %v69, 0.0
    %vm170 = vcmp.eq.f32.partialorder %v70, 0.0
    %vm171 = vcmp.eq.f32.partialorder %v71, 0.0
    %vm172 = vcmp.eq.f32.partialorder %v72, 0.0
    %vm173 = vcmp.eq.f32.partialorder %v73, 0.0
    %vm174 = vcmp.eq.f32.partialorder %v74, 0.0
    %vm175 = vcmp.eq.f32.partialorder %v75, 0.0
    %vm176 = vcmp.eq.f32.partialorder %v76, 0.0
    %vm177 = vcmp.eq.f32.partialorder %v77, 0.0
    %vm178 = vcmp.eq.f32.partialorder %v78, 0.0
    %vm179 = vcmp.eq.f32.partialorder %v79, 0.0
    %vm180 = vcmp.eq.f32.partialorder %v80, 0.0
    %vm181 = vcmp.eq.f32.partialorder %v81, 0.0
    %vm182 = vcmp.eq.f32.partialorder %v82, 0.0
    %vm183 = vcmp.eq.f32.partialorder %v83, 0.0
    %vm184 = vcmp.eq.f32.partialorder %v84, 0.0
    %vm185 = vcmp.eq.f32.partialorder %v85, 0.0
    %vm186 = vcmp.eq.f32.partialorder %v86, 0.0
    %vm187 = vcmp.eq.f32.partialorder %v87, 0.0
    %vm188 = vcmp.eq.f32.partialorder %v88, 0.0
    %vm189 = vcmp.eq.f32.partialorder %v89, 0.0
    %vm190 = vcmp.eq.f32.partialorder %v90, 0.0
    %vm191 = vcmp.eq.f32.partialorder %v91, 0.0
    %vm192 = vcmp.eq.f32.partialorder %v92, 0.0
    %vm193 = vcmp.eq.f32.partialorder %v93, 0.0
    %vm194 = vcmp.eq.f32.partialorder %v94, 0.0
    %vm195 = vcmp.eq.f32.partialorder %v95, 0.0
    %vm196 = vcmp.eq.f32.partialorder %v96, 0.0
    %vm197 = vcmp.eq.f32.partialorder %v97, 0.0
    %vm198 = vcmp.eq.f32.partialorder %v98, 0.0
    %vm199 = vcmp.eq.f32.partialorder %v99, 0.0
    %vm200 = vcmp.eq.f32.partialorder %v100, 0.0
    %vm201 = vcmp.eq.f32.partialorder %v101, 0.0
    %vm202 = vcmp.eq.f32.partialorder %v102, 0.0
    %vm203 = vcmp.eq.f32.partialorder %v103, 0.0
    %vm204 = vcmp.eq.f32.partialorder %v104, 0.0
    %vm205 = vcmp.eq.f32.partialorder %v105, 0.0
    %vm206 = vcmp.eq.f32.partialorder %v106, 0.0
    %vm207 = vcmp.eq.f32.partialorder %v107, 0.0
    %vm208 = vcmp.eq.f32.partialorder %v108, 0.0
    %vm209 = vcmp.eq.f32.partialorder %v109, 0.0
    %vm210 = vcmp.eq.f32.partialorder %v110, 0.0
    %vm211 = vcmp.eq.f32.partialorder %v111, 0.0
    %vm212 = vcmp.eq.f32.partialorder %v112, 0.0
    %vm213 = vcmp.eq.f32.partialorder %v113, 0.0
    %vm214 = vcmp.eq.f32.partialorder %v114, 0.0
    %vm215 = vcmp.eq.f32.partialorder %v115, 0.0
    %vm216 = vcmp.eq.f32.partialorder %v116, 0.0
    %vm217 = vcmp.eq.f32.partialorder %v117, 0.0
    %vm218 = vcmp.eq.f32.partialorder %v118, 0.0
    %vm219 = vcmp.eq.f32.partialorder %v119, 0.0
    %vm220 = vcmp.eq.f32.partialorder %v120, 0.0
    %vm221 = vcmp.eq.f32.partialorder %v121, 0.0
    %vm222 = vcmp.eq.f32.partialorder %v122, 0.0
    %vm223 = vcmp.eq.f32.partialorder %v123, 0.0
    %vm224 = vcmp.eq.f32.partialorder %v124, 0.0
    %vm225 = vcmp.eq.f32.partialorder %v125, 0.0
    %vm226 = vcmp.eq.f32.partialorder %v126, 0.0
    %vm227 = vcmp.eq.f32.partialorder %v127, 0.0
    %vm228 = vcmp.eq.f32.partialorder %v128, 0.0
    %vm229 = vcmp.eq.f32.partialorder %v129, 0.0
    %v230 = vsel %vm130, 1, 0
    %v231 = vsel %vm131, 1, 0
    %v232 = vsel %vm132, 1, 0
    %v233 = vsel %vm133, 1, 0
    %v234 = vsel %vm134, 1, 0
    %v235 = vsel %vm135, 1, 0
    %v236 = vsel %vm136, 1, 0
    %v237 = vsel %vm137, 1, 0
    %v238 = vsel %vm138, 1, 0
    %v239 = vsel %vm139, 1, 0
    %v240 = vsel %vm140, 1, 0
    %v241 = vsel %vm141, 1, 0
    %v242 = vsel %vm142, 1, 0
    %v243 = vsel %vm143, 1, 0
    %v244 = vsel %vm144, 1, 0
    %v245 = vsel %vm145, 1, 0
    %v246 = vsel %vm146, 1, 0
    %v247 = vsel %vm147, 1, 0
    %v248 = vsel %vm148, 1, 0
    %v249 = vsel %vm149, 1, 0
    %v250 = vsel %vm150, 1, 0
    %v251 = vsel %vm151, 1, 0
    %v252 = vsel %vm152, 1, 0
    %v253 = vsel %vm153, 1, 0
    %v254 = vsel %vm154, 1, 0
    %v255 = vsel %vm155, 1, 0
    %v256 = vsel %vm156, 1, 0
    %v257 = vsel %vm157, 1, 0
    %v258 = vsel %vm158, 1, 0
    %v259 = vsel %vm159, 1, 0
    %v260 = vsel %vm160, 1, 0
    %v261 = vsel %vm161, 1, 0
    %v262 = vsel %vm162, 1, 0
    %v263 = vsel %vm163, 1, 0
    %v264 = vsel %vm164, 1, 0
    %v265 = vsel %vm165, 1, 0
    %v266 = vsel %vm166, 1, 0
    %v267 = vsel %vm167, 1, 0
    %v268 = vsel %vm168, 1, 0
    %v269 = vsel %vm169, 1, 0
    %v270 = vsel %vm170, 1, 0
    %v271 = vsel %vm171, 1, 0
    %v272 = vsel %vm172, 1, 0
    %v273 = vsel %vm173, 1, 0
    %v274 = vsel %vm174, 1, 0
    %v275 = vsel %vm175, 1, 0
    %v276 = vsel %vm176, 1, 0
    %v277 = vsel %vm177, 1, 0
    %v278 = vsel %vm178, 1, 0
    %v279 = vsel %vm179, 1, 0
    %v280 = vsel %vm180, 1, 0
    %v281 = vsel %vm181, 1, 0
    %v282 = vsel %vm182, 1, 0
    %v283 = vsel %vm183, 1, 0
    %v284 = vsel %vm184, 1, 0
    %v285 = vsel %vm185, 1, 0
    %v286 = vsel %vm186, 1, 0
    %v287 = vsel %vm187, 1, 0
    %v288 = vsel %vm188, 1, 0
    %v289 = vsel %vm189, 1, 0
    %v290 = vsel %vm190, 1, 0
    %v291 = vsel %vm191, 1, 0
    %v292 = vsel %vm192, 1, 0
    %v293 = vsel %vm193, 1, 0
    %v294 = vsel %vm194, 1, 0
    %v295 = vsel %vm195, 1, 0
    %v296 = vsel %vm196, 1, 0
    %v297 = vsel %vm197, 1, 0
    %v298 = vsel %vm198, 1, 0
    %v299 = vsel %vm199, 1, 0
    %v300 = vsel %vm200, 1, 0
    %v301 = vsel %vm201, 1, 0
    %v302 = vsel %vm202, 1, 0
    %v303 = vsel %vm203, 1, 0
    %v304 = vsel %vm204, 1, 0
    %v305 = vsel %vm205, 1, 0
    %v306 = vsel %vm206, 1, 0
    %v307 = vsel %vm207, 1, 0
    %v308 = vsel %vm208, 1, 0
    %v309 = vsel %vm209, 1, 0
    %v310 = vsel %vm210, 1, 0
    %v311 = vsel %vm211, 1, 0
    %v312 = vsel %vm212, 1, 0
    %v313 = vsel %vm213, 1, 0
    %v314 = vsel %vm214, 1, 0
    %v315 = vsel %vm215, 1, 0
    %v316 = vsel %vm216, 1, 0
    %v317 = vsel %vm217, 1, 0
    %v318 = vsel %vm218, 1, 0
    %v319 = vsel %vm219, 1, 0
    %v320 = vsel %vm220, 1, 0
    %v321 = vsel %vm221, 1, 0
    %v322 = vsel %vm222, 1, 0
    %v323 = vsel %vm223, 1, 0
    %v324 = vsel %vm224, 1, 0
    %v325 = vsel %vm225, 1, 0
    %v326 = vsel %vm226, 1, 0
    %v327 = vsel %vm227, 1, 0
    %v328 = vsel %vm228, 1, 0
    %v329 = vsel %vm229, 1, 0
    %v330 = vcvt.s32.f32 %v230
    %v331 = vcvt.s32.f32 %v231
    %v332 = vcvt.s32.f32 %v232
    %v333 = vcvt.s32.f32 %v233
    %v334 = vcvt.s32.f32 %v234
    %v335 = vcvt.s32.f32 %v235
    %v336 = vcvt.s32.f32 %v236
    %v337 = vcvt.s32.f32 %v237
    %v338 = vcvt.s32.f32 %v238
    %v339 = vcvt.s32.f32 %v239
    %v340 = vcvt.s32.f32 %v240
    %v341 = vcvt.s32.f32 %v241
    %v342 = vcvt.s32.f32 %v242
    %v343 = vcvt.s32.f32 %v243
    %v344 = vcvt.s32.f32 %v244
    %v345 = vcvt.s32.f32 %v245
    %v346 = vcvt.s32.f32 %v246
    %v347 = vcvt.s32.f32 %v247
    %v348 = vcvt.s32.f32 %v248
    %v349 = vcvt.s32.f32 %v249
    %v350 = vcvt.s32.f32 %v250
    %v351 = vcvt.s32.f32 %v251
    %v352 = vcvt.s32.f32 %v252
    %v353 = vcvt.s32.f32 %v253
    %v354 = vcvt.s32.f32 %v254
    %v355 = vcvt.s32.f32 %v255
    %v356 = vcvt.s32.f32 %v256
    %v357 = vcvt.s32.f32 %v257
    %v358 = vcvt.s32.f32 %v258
    %v359 = vcvt.s32.f32 %v259
    %v360 = vcvt.s32.f32 %v260
    %v361 = vcvt.s32.f32 %v261
    %v362 = vcvt.s32.f32 %v262
    %v363 = vcvt.s32.f32 %v263
    %v364 = vcvt.s32.f32 %v264
    %v365 = vcvt.s32.f32 %v265
    %v366 = vcvt.s32.f32 %v266
    %v367 = vcvt.s32.f32 %v267
    %v368 = vcvt.s32.f32 %v268
    %v369 = vcvt.s32.f32 %v269
    %v370 = vcvt.s32.f32 %v270
    %v371 = vcvt.s32.f32 %v271
    %v372 = vcvt.s32.f32 %v272
    %v373 = vcvt.s32.f32 %v273
    %v374 = vcvt.s32.f32 %v274
    %v375 = vcvt.s32.f32 %v275
    %v376 = vcvt.s32.f32 %v276
    %v377 = vcvt.s32.f32 %v277
    %v378 = vcvt.s32.f32 %v278
    %v379 = vcvt.s32.f32 %v279
    %v380 = vcvt.s32.f32 %v280
    %v381 = vcvt.s32.f32 %v281
    %v382 = vcvt.s32.f32 %v282
    %v383 = vcvt.s32.f32 %v283
    %v384 = vcvt.s32.f32 %v284
    %v385 = vcvt.s32.f32 %v285
    %v386 = vcvt.s32.f32 %v286
    %v387 = vcvt.s32.f32 %v287
    %v388 = vcvt.s32.f32 %v288
    %v389 = vcvt.s32.f32 %v289
    %v390 = vcvt.s32.f32 %v290
    %v391 = vcvt.s32.f32 %v291
    %v392 = vcvt.s32.f32 %v292
    %v393 = vcvt.s32.f32 %v293
    %v394 = vcvt.s32.f32 %v294
    %v395 = vcvt.s32.f32 %v295
    %v396 = vcvt.s32.f32 %v296
    %v397 = vcvt.s32.f32 %v297
    %v398 = vcvt.s32.f32 %v298
    %v399 = vcvt.s32.f32 %v299
    %v400 = vcvt.s32.f32 %v300
    %v401 = vcvt.s32.f32 %v301
    %v402 = vcvt.s32.f32 %v302
    %v403 = vcvt.s32.f32 %v303
    %v404 = vcvt.s32.f32 %v304
    %v405 = vcvt.s32.f32 %v305
    %v406 = vcvt.s32.f32 %v306
    %v407 = vcvt.s32.f32 %v307
    %v408 = vcvt.s32.f32 %v308
    %v409 = vcvt.s32.f32 %v309
    %v410 = vcvt.s32.f32 %v310
    %v411 = vcvt.s32.f32 %v311
    %v412 = vcvt.s32.f32 %v312
    %v413 = vcvt.s32.f32 %v313
    %v414 = vcvt.s32.f32 %v314
    %v415 = vcvt.s32.f32 %v315
    %v416 = vcvt.s32.f32 %v316
    %v417 = vcvt.s32.f32 %v317
    %v418 = vcvt.s32.f32 %v318
    %v419 = vcvt.s32.f32 %v319
    %v420 = vcvt.s32.f32 %v320
    %v421 = vcvt.s32.f32 %v321
    %v422 = vcvt.s32.f32 %v322
    %v423 = vcvt.s32.f32 %v323
    %v424 = vcvt.s32.f32 %v324
    %v425 = vcvt.s32.f32 %v325
    %v426 = vcvt.s32.f32 %v326
    %v427 = vcvt.s32.f32 %v327
    %v428 = vcvt.s32.f32 %v328
    %v429 = vcvt.s32.f32 %v329
    %v430 = vrcp.pop 0.5
    %v431 = vmul.f32 0.5, %v430
    %v432 = vsub.f32 1.0, %v431
    %v433 = vmul.f32 %v430, %v432
    %v434 = vadd.f32 %v430, %v433
    %vm435 = vweird.f32 %v430
    %v436 = vsel %vm435, %v430, %v434
    %v437 = vmul.f32 %v28, %v436
    %v438 = vmul.f32 %v29, %v436
    %v439 = vlaneseq
    %v440 = vand.u32 %v439, 127
    %v441 = vadd.s32 %v440, 128
    %v442 = vadd.f32 %v437, 98.0
    %v443 = vadd.f32 %v438, 98.0
    %v444 = vcvt.f32.s32.to.zero.pseudo %v442
    %v445 = vcvt.f32.s32.to.zero.pseudo %v443
    %vm446 = vcmp.gt.s32.totalorder %v444, 0
    %v447 = vsel %vm446, %v444, 0
    %vm448 = vcmp.gt.s32.totalorder %v445, 0
    %v449 = vsel %vm448, %v445, 0
    %vm450 = vcmp.lt.s32.totalorder %v447, 199
    %v451 = vsel %vm450, %v447, 199
    %vm452 = vcmp.lt.s32.totalorder %v449, 199
    %v453 = vsel %vm452, %v449, 199
    %454 = vset.pattern.permute.xlu0 0
    %455 = vperm.xlu0 %454, %v451
    %v456 = vpop.permute.xlu0 %455
    %457 = vset.pattern.permute.xlu0 0
    %458 = vperm.xlu0 %457, %v453
    %v459 = vpop.permute.xlu0 %458
    %vm460 = vcmp.eq.s32.totalorder %v456, %v440
    %vm461 = vcmp.eq.s32.totalorder %v456, %v441
    %vm462 = vcmp.eq.s32.totalorder %v459, %v440
    %vm463 = vcmp.eq.s32.totalorder %v459, %v441
    %v464 = vsel %vm460, 1, 0
    %v465 = vsel %vm461, 1, 0
    %v466 = vsel %vm462, 1, 0
    %v467 = vsel %vm463, 1, 0
    %v468 = vcvt.s32.f32 %v464
    %v469 = vcvt.s32.f32 %v465
    %v470 = vcvt.s32.f32 %v466
    %v471 = vcvt.s32.f32 %v467
    %v472 = vadd.f32 %v468, 0.0
    %v473 = vadd.f32 %v469, 0.0
    %v474 = vadd.f32 %v470, 0.0
    %v475 = vadd.f32 %v471, 0.0
    %v476 = vadd.f32 %v437, 99.0
    %v477 = vadd.f32 %v438, 99.0
    %v478 = vcvt.f32.s32.to.zero.pseudo %v476
    %v479 = vcvt.f32.s32.to.zero.pseudo %v477
    %vm480 = vcmp.gt.s32.totalorder %v478, 0
    %v481 = vsel %vm480, %v478, 0
    %vm482 = vcmp.gt.s32.totalorder %v479, 0
    %v483 = vsel %vm482, %v479, 0
    %vm484 = vcmp.lt.s32.totalorder %v481, 199
    %v485 = vsel %vm484, %v481, 199
    %vm486 = vcmp.lt.s32.totalorder %v483, 199
    %v487 = vsel %vm486, %v483, 199
    %488 = vset.pattern.permute.xlu0 0
    %489 = vperm.xlu0 %488, %v485
    %v490 = vpop.permute.xlu0 %489
    %491 = vset.pattern.permute.xlu0 0
    %492 = vperm.xlu0 %491, %v487
    %v493 = vpop.permute.xlu0 %492
    %vm494 = vcmp.eq.s32.totalorder %v490, %v440
    %vm495 = vcmp.eq.s32.totalorder %v490, %v441
    %vm496 = vcmp.eq.s32.totalorder %v493, %v440
    %vm497 = vcmp.eq.s32.totalorder %v493, %v441
    %v498 = vsel %vm494, 1, 0
    %v499 = vsel %vm495, 1, 0
    %v500 = vsel %vm496, 1, 0
    %v501 = vsel %vm497, 1, 0
    %v502 = vcvt.s32.f32 %v498
    %v503 = vcvt.s32.f32 %v499
    %v504 = vcvt.s32.f32 %v500
    %v505 = vcvt.s32.f32 %v501
    %v506 = vadd.f32 %v472, %v502
    %v507 = vadd.f32 %v473, %v503
    %v508 = vadd.f32 %v474, %v504
    %v509 = vadd.f32 %v475, %v505
    %v510 = vadd.f32 %v437, 100.0
    %v511 = vadd.f32 %v438, 100.0
    %v512 = vcvt.f32.s32.to.zero.pseudo %v510
    %v513 = vcvt.f32.s32.to.zero.pseudo %v511
    %vm514 = vcmp.gt.s32.totalorder %v512, 0
    %v515 = vsel %vm514, %v512, 0
    %vm516 = vcmp.gt.s32.totalorder %v513, 0
    %v517 = vsel %vm516, %v513, 0
    %vm518 = vcmp.lt.s32.totalorder %v515, 199
    %v519 = vsel %vm518, %v515, 199
    %vm520 = vcmp.lt.s32.totalorder %v517, 199
    %v521 = vsel %vm520, %v517, 199
    %522 = vset.pattern.permute.xlu0 0
    %523 = vperm.xlu0 %522, %v519
    %v524 = vpop.permute.xlu0 %523
    %525 = vset.pattern.permute.xlu0 0
    %526 = vperm.xlu0 %525, %v521
    %v527 = vpop.permute.xlu0 %526
    %vm528 = vcmp.eq.s32.totalorder %v524, %v440
    %vm529 = vcmp.eq.s32.totalorder %v524, %v441
    %vm530 = vcmp.eq.s32.totalorder %v527, %v440
    %vm531 = vcmp.eq.s32.totalorder %v527, %v441
    %v532 = vsel %vm528, 1, 0
    %v533 = vsel %vm529, 1, 0
    %v534 = vsel %vm530, 1, 0
    %v535 = vsel %vm531, 1, 0
    %v536 = vcvt.s32.f32 %v532
    %v537 = vcvt.s32.f32 %v533
    %v538 = vcvt.s32.f32 %v534
    %v539 = vcvt.s32.f32 %v535
    %v540 = vadd.f32 %v506, %v536
    %v541 = vadd.f32 %v507, %v537
    %v542 = vadd.f32 %v508, %v538
    %v543 = vadd.f32 %v509, %v539
    %v544 = vadd.f32 %v437, 101.0
    %v545 = vadd.f32 %v438, 101.0
    %v546 = vcvt.f32.s32.to.zero.pseudo %v544
    %v547 = vcvt.f32.s32.to.zero.pseudo %v545
    %vm548 = vcmp.gt.s32.totalorder %v546, 0
    %v549 = vsel %vm548, %v546, 0
    %vm550 = vcmp.gt.s32.totalorder %v547, 0
    %v551 = vsel %vm550, %v547, 0
    %vm552 = vcmp.lt.s32.totalorder %v549, 199
    %v553 = vsel %vm552, %v549, 199
    %vm554 = vcmp.lt.s32.totalorder %v551, 199
    %v555 = vsel %vm554, %v551, 199
    %556 = vset.pattern.permute.xlu0 0
    %557 = vperm.xlu0 %556, %v553
    %v558 = vpop.permute.xlu0 %557
    %559 = vset.pattern.permute.xlu0 0
    %560 = vperm.xlu0 %559, %v555
    %v561 = vpop.permute.xlu0 %560
    %vm562 = vcmp.eq.s32.totalorder %v558, %v440
    %vm563 = vcmp.eq.s32.totalorder %v558, %v441
    %vm564 = vcmp.eq.s32.totalorder %v561, %v440
    %vm565 = vcmp.eq.s32.totalorder %v561, %v441
    %v566 = vsel %vm562, 1, 0
    %v567 = vsel %vm563, 1, 0
    %v568 = vsel %vm564, 1, 0
    %v569 = vsel %vm565, 1, 0
    %v570 = vcvt.s32.f32 %v566
    %v571 = vcvt.s32.f32 %v567
    %v572 = vcvt.s32.f32 %v568
    %v573 = vcvt.s32.f32 %v569
    %v574 = vadd.f32 %v540, %v570
    %v575 = vadd.f32 %v541, %v571
    %v576 = vadd.f32 %v542, %v572
    %v577 = vadd.f32 %v543, %v573
    %v578 = vadd.f32 %v437, 97.0
    %v579 = vadd.f32 %v438, 97.0
    %v580 = vcvt.f32.s32.to.zero.pseudo %v578
    %v581 = vcvt.f32.s32.to.zero.pseudo %v579
    %vm582 = vcmp.gt.s32.totalorder %v580, 0
    %v583 = vsel %vm582, %v580, 0
    %vm584 = vcmp.gt.s32.totalorder %v581, 0
    %v585 = vsel %vm584, %v581, 0
    %vm586 = vcmp.lt.s32.totalorder %v583, 199
    %v587 = vsel %vm586, %v583, 199
    %vm588 = vcmp.lt.s32.totalorder %v585, 199
    %v589 = vsel %vm588, %v585, 199
    %590 = vset.pattern.permute.xlu0 1
    %591 = vperm.xlu0 %590, %v587
    %v592 = vpop.permute.xlu0 %591
    %593 = vset.pattern.permute.xlu0 1
    %594 = vperm.xlu0 %593, %v589
    %v595 = vpop.permute.xlu0 %594
    %vm596 = vcmp.eq.s32.totalorder %v592, %v440
    %vm597 = vcmp.eq.s32.totalorder %v592, %v441
    %vm598 = vcmp.eq.s32.totalorder %v595, %v440
    %vm599 = vcmp.eq.s32.totalorder %v595, %v441
    %v600 = vsel %vm596, 1, 0
    %v601 = vsel %vm597, 1, 0
    %v602 = vsel %vm598, 1, 0
    %v603 = vsel %vm599, 1, 0
    %v604 = vcvt.s32.f32 %v600
    %v605 = vcvt.s32.f32 %v601
    %v606 = vcvt.s32.f32 %v602
    %v607 = vcvt.s32.f32 %v603
    %v608 = vadd.f32 %v604, 0.0
    %v609 = vadd.f32 %v605, 0.0
    %v610 = vadd.f32 %v606, 0.0
    %v611 = vadd.f32 %v607, 0.0
    %612 = vset.pattern.permute.xlu0 1
    %613 = vperm.xlu0 %612, %v451
    %v614 = vpop.permute.xlu0 %613
    %615 = vset.pattern.permute.xlu0 1
    %616 = vperm.xlu0 %615, %v453
    %v617 = vpop.permute.xlu0 %616
    %vm618 = vcmp.eq.s32.totalorder %v614, %v440
    %vm619 = vcmp.eq.s32.totalorder %v614, %v441
    %vm620 = vcmp.eq.s32.totalorder %v617, %v440
    %vm621 = vcmp.eq.s32.totalorder %v617, %v441
    %v622 = vsel %vm618, 1, 0
    %v623 = vsel %vm619, 1, 0
    %v624 = vsel %vm620, 1, 0
    %v625 = vsel %vm621, 1, 0
    %v626 = vcvt.s32.f32 %v622
    %v627 = vcvt.s32.f32 %v623
    %v628 = vcvt.s32.f32 %v624
    %v629 = vcvt.s32.f32 %v625
    %v630 = vadd.f32 %v608, %v626
    %v631 = vadd.f32 %v609, %v627
    %v632 = vadd.f32 %v610, %v628
    %v633 = vadd.f32 %v611, %v629
    %634 = vset.pattern.permute.xlu0 1
    %635 = vperm.xlu0 %634, %v485
    %v636 = vpop.permute.xlu0 %635
    %637 = vset.pattern.permute.xlu0 1
    %638 = vperm.xlu0 %637, %v487
    %v639 = vpop.permute.xlu0 %638
    %vm640 = vcmp.eq.s32.totalorder %v636, %v440
    %vm641 = vcmp.eq.s32.totalorder %v636, %v441
    %vm642 = vcmp.eq.s32.totalorder %v639, %v440
    %vm643 = vcmp.eq.s32.totalorder %v639, %v441
    %v644 = vsel %vm640, 1, 0
    %v645 = vsel %vm641, 1, 0
    %v646 = vsel %vm642, 1, 0
    %v647 = vsel %vm643, 1, 0
    %v648 = vcvt.s32.f32 %v644
    %v649 = vcvt.s32.f32 %v645
    %v650 = vcvt.s32.f32 %v646
    %v651 = vcvt.s32.f32 %v647
    %v652 = vadd.f32 %v630, %v648
    %v653 = vadd.f32 %v631, %v649
    %v654 = vadd.f32 %v632, %v650
    %v655 = vadd.f32 %v633, %v651
    %656 = vset.pattern.permute.xlu0 1
    %657 = vperm.xlu0 %656, %v519
    %v658 = vpop.permute.xlu0 %657
    %659 = vset.pattern.permute.xlu0 1
    %660 = vperm.xlu0 %659, %v521
    %v661 = vpop.permute.xlu0 %660
    %vm662 = vcmp.eq.s32.totalorder %v658, %v440
    %vm663 = vcmp.eq.s32.totalorder %v658, %v441
    %vm664 = vcmp.eq.s32.totalorder %v661, %v440
    %vm665 = vcmp.eq.s32.totalorder %v661, %v441
    %v666 = vsel %vm662, 1, 0
    %v667 = vsel %vm663, 1, 0
    %v668 = vsel %vm664, 1, 0
    %v669 = vsel %vm665, 1, 0
    %v670 = vcvt.s32.f32 %v666
    %v671 = vcvt.s32.f32 %v667
    %v672 = vcvt.s32.f32 %v668
    %v673 = vcvt.s32.f32 %v669
    %v674 = vadd.f32 %v652, %v670
    %v675 = vadd.f32 %v653, %v671
    %v676 = vadd.f32 %v654, %v672
    %v677 = vadd.f32 %v655, %v673
    %678 = vset.pattern.permute.xlu0 1
    %679 = vperm.xlu0 %678, %v553
    %v680 = vpop.permute.xlu0 %679
    %681 = vset.pattern.permute.xlu0 1
    %682 = vperm.xlu0 %681, %v555
    %v683 = vpop.permute.xlu0 %682
    %vm684 = vcmp.eq.s32.totalorder %v680, %v440
    %vm685 = vcmp.eq.s32.totalorder %v680, %v441
    %vm686 = vcmp.eq.s32.totalorder %v683, %v440
    %vm687 = vcmp.eq.s32.totalorder %v683, %v441
    %v688 = vsel %vm684, 1, 0
    %v689 = vsel %vm685, 1, 0
    %v690 = vsel %vm686, 1, 0
    %v691 = vsel %vm687, 1, 0
    %v692 = vcvt.s32.f32 %v688
    %v693 = vcvt.s32.f32 %v689
    %v694 = vcvt.s32.f32 %v690
    %v695 = vcvt.s32.f32 %v691
    %v696 = vadd.f32 %v674, %v692
    %v697 = vadd.f32 %v675, %v693
    %v698 = vadd.f32 %v676, %v694
    %v699 = vadd.f32 %v677, %v695
    %v700 = vadd.f32 %v437, 102.0
    %v701 = vadd.f32 %v438, 102.0
    %v702 = vcvt.f32.s32.to.zero.pseudo %v700
    %v703 = vcvt.f32.s32.to.zero.pseudo %v701
    %vm704 = vcmp.gt.s32.totalorder %v702, 0
    %v705 = vsel %vm704, %v702, 0
    %vm706 = vcmp.gt.s32.totalorder %v703, 0
    %v707 = vsel %vm706, %v703, 0
    %vm708 = vcmp.lt.s32.totalorder %v705, 199
    %v709 = vsel %vm708, %v705, 199
    %vm710 = vcmp.lt.s32.totalorder %v707, 199
    %v711 = vsel %vm710, %v707, 199
    %712 = vset.pattern.permute.xlu0 1
    %713 = vperm.xlu0 %712, %v709
    %v714 = vpop.permute.xlu0 %713
    %715 = vset.pattern.permute.xlu0 1
    %716 = vperm.xlu0 %715, %v711
    %v717 = vpop.permute.xlu0 %716
    %vm718 = vcmp.eq.s32.totalorder %v714, %v440
    %vm719 = vcmp.eq.s32.totalorder %v714, %v441
    %vm720 = vcmp.eq.s32.totalorder %v717, %v440
    %vm721 = vcmp.eq.s32.totalorder %v717, %v441
    %v722 = vsel %vm718, 1, 0
    %v723 = vsel %vm719, 1, 0
    %v724 = vsel %vm720, 1, 0
    %v725 = vsel %vm721, 1, 0
    %v726 = vcvt.s32.f32 %v722
    %v727 = vcvt.s32.f32 %v723
    %v728 = vcvt.s32.f32 %v724
    %v729 = vcvt.s32.f32 %v725
    %v730 = vadd.f32 %v696, %v726
    %v731 = vadd.f32 %v697, %v727
    %v732 = vadd.f32 %v698, %v728
    %v733 = vadd.f32 %v699, %v729
    %v734 = vadd.f32 %v437, 103.0
    %v735 = vadd.f32 %v438, 103.0
    %v736 = vcvt.f32.s32.to.zero.pseudo %v734
    %v737 = vcvt.f32.s32.to.zero.pseudo %v735
    %vm738 = vcmp.gt.s32.totalorder %v736, 0
    %v739 = vsel %vm738, %v736, 0
    %vm740 = vcmp.gt.s32.totalorder %v737, 0
    %v741 = vsel %vm740, %v737, 0
    %vm742 = vcmp.lt.s32.totalorder %v739, 199
    %v743 = vsel %vm742, %v739, 199
    %vm744 = vcmp.lt.s32.totalorder %v741, 199
    %v745 = vsel %vm744, %v741, 199
    %746 = vset.pattern.permute.xlu0 1
    %747 = vperm.xlu0 %746, %v743
    %v748 = vpop.permute.xlu0 %747
    %749 = vset.pattern.permute.xlu0 1
    %750 = vperm.xlu0 %749, %v745
    %v751 = vpop.permute.xlu0 %750
    %vm752 = vcmp.eq.s32.totalorder %v748, %v440
    %vm753 = vcmp.eq.s32.totalorder %v748, %v441
    %vm754 = vcmp.eq.s32.totalorder %v751, %v440
    %vm755 = vcmp.eq.s32.totalorder %v751, %v441
    %v756 = vsel %vm752, 1, 0
    %v757 = vsel %vm753, 1, 0
    %v758 = vsel %vm754, 1, 0
    %v759 = vsel %vm755, 1, 0
    %v760 = vcvt.s32.f32 %v756
    %v761 = vcvt.s32.f32 %v757
    %v762 = vcvt.s32.f32 %v758
    %v763 = vcvt.s32.f32 %v759
    %v764 = vadd.f32 %v730, %v760
    %v765 = vadd.f32 %v731, %v761
    %v766 = vadd.f32 %v732, %v762
    %v767 = vadd.f32 %v733, %v763
    %v768 = vadd.f32 %v437, 104.0
    %v769 = vadd.f32 %v438, 104.0
    %v770 = vcvt.f32.s32.to.zero.pseudo %v768
    %v771 = vcvt.f32.s32.to.zero.pseudo %v769
    %vm772 = vcmp.gt.s32.totalorder %v770, 0
    %v773 = vsel %vm772, %v770, 0
    %vm774 = vcmp.gt.s32.totalorder %v771, 0
    %v775 = vsel %vm774, %v771, 0
    %vm776 = vcmp.lt.s32.totalorder %v773, 199
    %v777 = vsel %vm776, %v773, 199
    %vm778 = vcmp.lt.s32.totalorder %v775, 199
    %v779 = vsel %vm778, %v775, 199
    %780 = vset.pattern.permute.xlu0 1
    %781 = vperm.xlu0 %780, %v777
    %v782 = vpop.permute.xlu0 %781
    %783 = vset.pattern.permute.xlu0 1
    %784 = vperm.xlu0 %783, %v779
    %v785 = vpop.permute.xlu0 %784
    %vm786 = vcmp.eq.s32.totalorder %v782, %v440
    %vm787 = vcmp.eq.s32.totalorder %v782, %v441
    %vm788 = vcmp.eq.s32.totalorder %v785, %v440
    %vm789 = vcmp.eq.s32.totalorder %v785, %v441
    %v790 = vsel %vm786, 1, 0
    %v791 = vsel %vm787, 1, 0
    %v792 = vsel %vm788, 1, 0
    %v793 = vsel %vm789, 1, 0
    %v794 = vcvt.s32.f32 %v790
    %v795 = vcvt.s32.f32 %v791
    %v796 = vcvt.s32.f32 %v792
    %v797 = vcvt.s32.f32 %v793
    %v798 = vadd.f32 %v764, %v794
    %v799 = vadd.f32 %v765, %v795
    %v800 = vadd.f32 %v766, %v796
    %v801 = vadd.f32 %v767, %v797
    %vm802 = vcmask 588800
    %v804 = vsel %vm802, %v575, 0
    %806 = vmatpush.msra.mxu0 %v360
    %807 = vmatpush.msra.mxu0 %v358
    %808 = vmatpush.msra.mxu0 %v356
    %809 = vmatpush.msra.mxu0 %v354
    %810 = vmatpush.msra.mxu0 %v352
    %811 = vmatpush.msra.mxu0 %v350
    %812 = vmatpush.msra.mxu0 %v348
    %813 = vmatpush.msra.mxu0 %v346
    %814 = vmatpush.msra.mxu0 %v344
    %815 = vmatpush.msra.mxu0 %v342
    %816 = vmatpush.msra.mxu0 %v340
    %817 = vmatpush.msra.mxu0 %v338
    %818 = vmatpush.msra.mxu0 %v336
    %819 = vmatpush.msra.mxu0 %v334
    %820 = vmatpush.msra.mxu0 %v332
    %821 = vmatpush.msra.mxu0 %v330
    %822 = vmatmul.f32.gmra.mxu0 %v574
    %v823 = vpop.f32.mrf.mxu0
    %v824 = vadd.f32 0.0, %v823
    %825 = vdwg.mxu0
    %826 = vmatpush.msra.mxu0 0.0
    %827 = vmatpush.msra.mxu0 0.0
    %828 = vmatpush.msra.mxu0 0.0
    %829 = vmatpush.msra.mxu0 0.0
    %830 = vmatpush.msra.mxu0 0.0
    %831 = vmatpush.msra.mxu0 0.0
    %832 = vmatpush.msra.mxu0 0.0
    %833 = vmatpush.msra.mxu0 %v378
    %834 = vmatpush.msra.mxu0 %v376
    %835 = vmatpush.msra.mxu0 %v374
    %836 = vmatpush.msra.mxu0 %v372
    %837 = vmatpush.msra.mxu0 %v370
    %838 = vmatpush.msra.mxu0 %v368
    %839 = vmatpush.msra.mxu0 %v366
    %840 = vmatpush.msra.mxu0 %v364
    %841 = vmatpush.msra.mxu0 %v362
    %842 = vmatmul.f32.gmra.mxu0 %v804
    %v843 = vpop.f32.mrf.mxu0
    %v844 = vadd.f32 %v824, %v843
    %845 = vdwg.mxu0
    %846 = vmatpush.msra.mxu0 %v361
    %847 = vmatpush.msra.mxu0 %v359
    %848 = vmatpush.msra.mxu0 %v357
    %849 = vmatpush.msra.mxu0 %v355
    %850 = vmatpush.msra.mxu0 %v353
    %851 = vmatpush.msra.mxu0 %v351
    %852 = vmatpush.msra.mxu0 %v349
    %853 = vmatpush.msra.mxu0 %v347
    %854 = vmatpush.msra.mxu0 %v345
    %855 = vmatpush.msra.mxu0 %v343
    %856 = vmatpush.msra.mxu0 %v341
    %857 = vmatpush.msra.mxu0 %v339
    %858 = vmatpush.msra.mxu0 %v337
    %859 = vmatpush.msra.mxu0 %v335
    %860 = vmatpush.msra.mxu0 %v333
    %861 = vmatpush.msra.mxu0 %v331
    %862 = vmatmul.f32.gmra.mxu0 %v574
    %v863 = vpop.f32.mrf.mxu0
    %v864 = vadd.f32 0.0, %v863
    %865 = vdwg.mxu0
    %866 = vmatpush.msra.mxu0 0.0
    %867 = vmatpush.msra.mxu0 0.0
    %868 = vmatpush.msra.mxu0 0.0
    %869 = vmatpush.msra.mxu0 0.0
    %870 = vmatpush.msra.mxu0 0.0
    %871 = vmatpush.msra.mxu0 0.0
    %872 = vmatpush.msra.mxu0 0.0
    %873 = vmatpush.msra.mxu0 %v379
    %874 = vmatpush.msra.mxu0 %v377
    %875 = vmatpush.msra.mxu0 %v375
    %876 = vmatpush.msra.mxu0 %v373
    %877 = vmatpush.msra.mxu0 %v371
    %878 = vmatpush.msra.mxu0 %v369
    %879 = vmatpush.msra.mxu0 %v367
    %880 = vmatpush.msra.mxu0 %v365
    %881 = vmatpush.msra.mxu0 %v363
    %882 = vmatmul.f32.gmra.mxu0 %v804
    %v883 = vpop.f32.mrf.mxu0
    %v884 = vadd.f32 %v864, %v883
    %885 = vdwg.mxu0
    %v887 = vsel %vm802, %v577, 0
    %889 = vmatpush.msra.mxu0 %v410
    %890 = vmatpush.msra.mxu0 %v408
    %891 = vmatpush.msra.mxu0 %v406
    %892 = vmatpush.msra.mxu0 %v404
    %893 = vmatpush.msra.mxu0 %v402
    %894 = vmatpush.msra.mxu0 %v400
    %895 = vmatpush.msra.mxu0 %v398
    %896 = vmatpush.msra.mxu0 %v396
    %897 = vmatpush.msra.mxu0 %v394
    %898 = vmatpush.msra.mxu0 %v392
    %899 = vmatpush.msra.mxu0 %v390
    %900 = vmatpush.msra.mxu0 %v388
    %901 = vmatpush.msra.mxu0 %v386
    %902 = vmatpush.msra.mxu0 %v384
    %903 = vmatpush.msra.mxu0 %v382
    %904 = vmatpush.msra.mxu0 %v380
    %905 = vmatmul.f32.gmra.mxu0 %v576
    %v906 = vpop.f32.mrf.mxu0
    %v907 = vadd.f32 0.0, %v906
    %908 = vdwg.mxu0
    %909 = vmatpush.msra.mxu0 0.0
    %910 = vmatpush.msra.mxu0 0.0
    %911 = vmatpush.msra.mxu0 0.0
    %912 = vmatpush.msra.mxu0 0.0
    %913 = vmatpush.msra.mxu0 0.0
    %914 = vmatpush.msra.mxu0 0.0
    %915 = vmatpush.msra.mxu0 0.0
    %916 = vmatpush.msra.mxu0 %v428
    %917 = vmatpush.msra.mxu0 %v426
    %918 = vmatpush.msra.mxu0 %v424
    %919 = vmatpush.msra.mxu0 %v422
    %920 = vmatpush.msra.mxu0 %v420
    %921 = vmatpush.msra.mxu0 %v418
    %922 = vmatpush.msra.mxu0 %v416
    %923 = vmatpush.msra.mxu0 %v414
    %924 = vmatpush.msra.mxu0 %v412
    %925 = vmatmul.f32.gmra.mxu0 %v887
    %v926 = vpop.f32.mrf.mxu0
    %v927 = vadd.f32 %v907, %v926
    %928 = vdwg.mxu0
    %929 = vmatpush.msra.mxu0 %v411
    %930 = vmatpush.msra.mxu0 %v409
    %931 = vmatpush.msra.mxu0 %v407
    %932 = vmatpush.msra.mxu0 %v405
    %933 = vmatpush.msra.mxu0 %v403
    %934 = vmatpush.msra.mxu0 %v401
    %935 = vmatpush.msra.mxu0 %v399
    %936 = vmatpush.msra.mxu0 %v397
    %937 = vmatpush.msra.mxu0 %v395
    %938 = vmatpush.msra.mxu0 %v393
    %939 = vmatpush.msra.mxu0 %v391
    %940 = vmatpush.msra.mxu0 %v389
    %941 = vmatpush.msra.mxu0 %v387
    %942 = vmatpush.msra.mxu0 %v385
    %943 = vmatpush.msra.mxu0 %v383
    %944 = vmatpush.msra.mxu0 %v381
    %945 = vmatmul.f32.gmra.mxu0 %v576
    %v946 = vpop.f32.mrf.mxu0
    %v947 = vadd.f32 0.0, %v946
    %948 = vdwg.mxu0
    %949 = vmatpush.msra.mxu0 0.0
    %950 = vmatpush.msra.mxu0 0.0
    %951 = vmatpush.msra.mxu0 0.0
    %952 = vmatpush.msra.mxu0 0.0
    %953 = vmatpush.msra.mxu0 0.0
    %954 = vmatpush.msra.mxu0 0.0
    %955 = vmatpush.msra.mxu0 0.0
    %956 = vmatpush.msra.mxu0 %v429
    %957 = vmatpush.msra.mxu0 %v427
    %958 = vmatpush.msra.mxu0 %v425
    %959 = vmatpush.msra.mxu0 %v423
    %960 = vmatpush.msra.mxu0 %v421
    %961 = vmatpush.msra.mxu0 %v419
    %962 = vmatpush.msra.mxu0 %v417
    %963 = vmatpush.msra.mxu0 %v415
    %964 = vmatpush.msra.mxu0 %v413
    %965 = vmatmul.f32.gmra.mxu0 %v887
    %v966 = vpop.f32.mrf.mxu0
    %v967 = vadd.f32 %v947, %v966
    %968 = vdwg.mxu0
    %v969 = vmul.f32 %v844, %v798
    %v970 = vmul.f32 %v884, %v799
    %v971 = vmul.f32 %v927, %v800
    %v972 = vmul.f32 %v967, %v801
    %v973 = vsel %vm802, %v970, 0.0
    %v974 = vadd.f32 %v969, %v973
    %975 = vadd.xlane.f32.xlu0 %v974
    %v976 = vpop.xlane.xlu0 %975
    %v977 = vsel %vm802, %v972, 0.0
    %v978 = vadd.f32 %v971, %v977
    %979 = vadd.xlane.f32.xlu0 %v978
    %v980 = vpop.xlane.xlu0 %979
    %v981 = vmul.f32 %v976, 5.0
    %v982 = vmul.f32 %v980, 5.0
    %v985 = vperm.slane %v981, %v440
    %v986 = vperm.slane %v982, %v440
    %vm987 = vcmask 1041409
    %v988 = vsel %vm987, %v986, %v985
    %vm990 = vcmask 58368
    %991 = vst.msk [vmem:[#allocation5] sm:$0x3] %vm990, %v988
    // Predicated region
    $region14: #{tpu_custom_call.1} parent=1 // pred_check
      _
    $region15: #{tpu_custom_call.1} parent=1 // pred_check_branch
      %993 = sbr.rel (0) target = $region17
    $region16: #{tpu_custom_call.1} parent=1 // pred_region
      %995 = vsyncadd [#allocation4], 0
      %s997 = sshll.u32 [#allocation5], 4
      %s998 = int_to_ptr.vmem [resolvable:$true] %s997
      %s999 = sshll.u32 %s2, 4
      %s1000 = int_to_ptr.hbm [resolvable:$true] %s999
      %1002 = dma.vmem_to_hbm [thread:$0]  %s998, 32, %s1000, [#allocation4]
    $region17: #{tpu_custom_call.1} parent=1 // pred_fallthru
      _
    // Predicated region
    $region18: #{tpu_custom_call.1} parent=1 // pred_check
      _
    $region19: #{tpu_custom_call.1} parent=1 // pred_check_branch
      %1004 = sbr.rel (0) target = $region21
    $region20: #{tpu_custom_call.1} parent=1 // pred_region
      %1006 = dma.done [#allocation4], 32
    $region21: #{tpu_custom_call.1} parent=1 // pred_fallthru
      _
    %1007 = vsyncpa [#allocation3], 1
    %1008 = vsyncpa [#allocation4], 1

</llo_original>
